<compile_context>
chip_gen: v7x
topology: tpu7x:2x2x1
jax: 0.10.0
libtpu: 0.0.40
codegen_flags: <defaults>
</compile_context>

<pallas_src>
import math

import jax
import jax.numpy as jnp
from jax.experimental import pallas as pl
from jax.experimental.pallas import tpu as pltpu

LN_EPS = 1e-5                      # torch.nn.LayerNorm default
VMEM_LIMIT = 32 * 1024 * 1024      # safe on v5e/v6e/v7x with the conservative tiles below
# NOTE: weights/activations kept in f32 for numerical fidelity to the PyTorch reference;
# bf16 MXU operands (v6e/v7x) would be a further throughput win.


# ----------------------------- tiling helper -----------------------------

def _tile(dim, target, align):
    """Largest t <= target with t % align == 0 and dim % t == 0; else the full dim."""
    if dim <= target or dim % align != 0:
        return dim
    t = min(target, dim)
    t -= t % align
    while t >= align:
        if dim % t == 0:
            return t
        t -= align
    return dim


def _gelu(x):
    # GLM / megatron tanh-approx GeLU
    return 0.5 * x * (1.0 + jnp.tanh(0.7978845608028654 * x * (1.0 + 0.044715 * x * x)))


# ----------------------------- fused (LN ->) linear (-> act / +residual) -----------------------------

def _make_linear_kernel(has_ln, has_res, activation):
    def kernel(*refs):
        i = 0
        x_ref = refs[i]; i += 1
        w_ref = refs[i]; i += 1
        b_ref = refs[i]; i += 1
        if has_ln:
            g_ref, beta_ref = refs[i], refs[i + 1]; i += 2
        if has_res:
            r_ref = refs[i]; i += 1
        o_ref, acc_ref = refs[i], refs[i + 1]

        k_idx = pl.program_id(2)

        @pl.when(k_idx == 0)
        def _():
            acc_ref[...] = jnp.zeros(acc_ref.shape, jnp.float32)

        x = x_ref[...].astype(jnp.float32)
        if has_ln:
            # Fused LayerNorm prologue (tk == K, so each tile holds complete rows).
            mu = jnp.mean(x, axis=-1, keepdims=True)
            var = jnp.mean(jnp.square(x - mu), axis=-1, keepdims=True)
            x = (x - mu) * jax.lax.rsqrt(var + LN_EPS)
            x = x * g_ref[...].astype(jnp.float32) + beta_ref[...].astype(jnp.float32)

        w = w_ref[...].astype(jnp.float32)
        # x: [tm, tk], w: [tn, tk] (PyTorch [out, in]); contract K on both operands
        # directly — no in-kernel transpose.
        acc_ref[...] += jax.lax.dot_general(
            x, w, dimension_numbers=(((1,), (1,)), ((), ())),
            preferred_element_type=jnp.float32)

        @pl.when(k_idx == pl.num_programs(2) - 1)
        def _():
            y = acc_ref[...] + b_ref[...].astype(jnp.float32)
            if activation == "gelu":
                y = _gelu(y)
            if has_res:
                y = y + r_ref[...].astype(jnp.float32)
            o_ref[...] = y.astype(o_ref.dtype)

    return kernel


def fused_linear(x, w, b, *, ln=None, residual=None, activation=None,
                 tm=256, tn=256, tk=512):
    """y = [LN(x)] @ w.T + b  (optionally GELU'd, optionally + residual).

    x: [M, K]   w: [N, K] (PyTorch F.linear layout)   b: [N]
    ln: optional (gamma[K], beta[K]) applied to x before the matmul.
    residual: optional [M, N] added in the epilogue.
    """
    M, K = x.shape
    N = w.shape[0]
    if ln is not None:
        tk = K                      # LN prologue needs the whole contraction row per tile
    tm = _tile(M, tm, 8)
    tn = _tile(N, tn, 128)
    tk = _tile(K, tk, 128)
    grid = (M // tm, N // tn, K // tk)

    in_specs = [
        pl.BlockSpec((tm, tk), lambda i, j, k: (i, k)),
        pl.BlockSpec((tn, tk), lambda i, j, k: (j, k)),
        pl.BlockSpec((1, tn), lambda i, j, k: (0, j)),
    ]
    args = [x, w, b.reshape(1, N)]
    if ln is not None:
        gamma, beta = ln
        in_specs += [pl.BlockSpec((1, tk), lambda i, j, k: (0, k)),
                     pl.BlockSpec((1, tk), lambda i, j, k: (0, k))]
        args += [gamma.reshape(1, K), beta.reshape(1, K)]
    if residual is not None:
        in_specs.append(pl.BlockSpec((tm, tn), lambda i, j, k: (i, j)))
        args.append(residual)

    return pl.pallas_call(
        _make_linear_kernel(ln is not None, residual is not None, activation),
        out_shape=jax.ShapeDtypeStruct((M, N), x.dtype),
        grid=grid,
        in_specs=in_specs,
        out_specs=pl.BlockSpec((tm, tn), lambda i, j, k: (i, j)),
        scratch_shapes=[pltpu.VMEM((tm, tn), jnp.float32)],
        compiler_params=pltpu.CompilerParams(
            dimension_semantics=("parallel", "parallel", "arbitrary"),
            vmem_limit_bytes=VMEM_LIMIT),
    )(*args)


# ----------------------------- standalone LayerNorm (encoder final LN) -----------------------------

def _layernorm_kernel(x_ref, g_ref, b_ref, o_ref):
    x = x_ref[...].astype(jnp.float32)
    mu = jnp.mean(x, axis=-1, keepdims=True)
    var = jnp.mean(jnp.square(x - mu), axis=-1, keepdims=True)
    y = (x - mu) * jax.lax.rsqrt(var + LN_EPS)
    o_ref[...] = (y * g_ref[...].astype(jnp.float32)
                  + b_ref[...].astype(jnp.float32)).astype(o_ref.dtype)


def pallas_layernorm(x, gamma, beta, *, tm=256):
    M, H = x.shape
    tm = _tile(M, tm, 8)
    return pl.pallas_call(
        _layernorm_kernel,
        out_shape=jax.ShapeDtypeStruct((M, H), x.dtype),
        grid=(M // tm,),
        in_specs=[
            pl.BlockSpec((tm, H), lambda i: (i, 0)),
            pl.BlockSpec((1, H), lambda i: (0, 0)),
            pl.BlockSpec((1, H), lambda i: (0, 0)),
        ],
        out_specs=pl.BlockSpec((tm, H), lambda i: (i, 0)),
        compiler_params=pltpu.CompilerParams(
            dimension_semantics=("parallel",),
            vmem_limit_bytes=VMEM_LIMIT),
    )(x, gamma.reshape(1, H), beta.reshape(1, H))


# ----------------------------- flash-style attention -----------------------------

def _make_flash_attn_kernel(sm_scale):
    def kernel(q_ref, k_ref, v_ref, msk_ref, o_ref, m_sc, l_sc, acc_sc):
        kv = pl.program_id(3)

        @pl.when(kv == 0)
        def _():
            m_sc[...] = jnp.full(m_sc.shape, -jnp.inf, jnp.float32)
            l_sc[...] = jnp.zeros(l_sc.shape, jnp.float32)
            acc_sc[...] = jnp.zeros(acc_sc.shape, jnp.float32)

        q = q_ref[0, 0].astype(jnp.float32) * sm_scale
        k = k_ref[0, 0].astype(jnp.float32)
        v = v_ref[0, 0].astype(jnp.float32)
        msk = msk_ref[0, 0].astype(jnp.float32)

        s = jax.lax.dot_general(q, k, dimension_numbers=(((1,), (1,)), ((), ())),
                                preferred_element_type=jnp.float32)
        # GLM mask formula: scores * mask - 10000 * (1 - mask)
        s = s * msk - 10000.0 * (1.0 - msk)

        m_prev = m_sc[...]
        m_new = jnp.maximum(m_prev, jnp.max(s, axis=-1, keepdims=True))
        alpha = jnp.exp(m_prev - m_new)
        p = jnp.exp(s - m_new)
        l_sc[...] = alpha * l_sc[...] + jnp.sum(p, axis=-1, keepdims=True)
        acc_sc[...] = alpha * acc_sc[...] + jnp.dot(p, v, preferred_element_type=jnp.float32)
        m_sc[...] = m_new

        @pl.when(kv == pl.num_programs(3) - 1)
        def _():
            o_ref[0, 0] = (acc_sc[...] * pl.reciprocal(l_sc[...], approx=True)
                           ).astype(o_ref.dtype)

    return kernel


def flash_attention(q, k, v, mask, *, tq=128, tkv=256):
    """q/k/v: [B, nh, S, hd], mask: [B, 1, S, S] with 1 = attend, 0 = masked."""
    B, nh, S, hd = q.shape
    tq = _tile(S, tq, 8)
    tkv = _tile(S, tkv, 128)
    grid = (B, nh, S // tq, S // tkv)
    return pl.pallas_call(
        _make_flash_attn_kernel(1.0 / math.sqrt(hd)),
        out_shape=jax.ShapeDtypeStruct((B, nh, S, hd), q.dtype),
        grid=grid,
        in_specs=[
            pl.BlockSpec((1, 1, tq, hd), lambda b, h, qi, ki: (b, h, qi, 0)),
            pl.BlockSpec((1, 1, tkv, hd), lambda b, h, qi, ki: (b, h, ki, 0)),
            pl.BlockSpec((1, 1, tkv, hd), lambda b, h, qi, ki: (b, h, ki, 0)),
            pl.BlockSpec((1, 1, tq, tkv), lambda b, h, qi, ki: (b, 0, qi, ki)),
        ],
        out_specs=pl.BlockSpec((1, 1, tq, hd), lambda b, h, qi, ki: (b, h, qi, 0)),
        scratch_shapes=[
            pltpu.VMEM((tq, 1), jnp.float32),     # running max
            pltpu.VMEM((tq, 1), jnp.float32),     # running sum
            pltpu.VMEM((tq, hd), jnp.float32),    # output accumulator
        ],
        compiler_params=pltpu.CompilerParams(
            dimension_semantics=("parallel", "parallel", "parallel", "arbitrary"),
            vmem_limit_bytes=VMEM_LIMIT),
    )(q, k, v, mask)


# ----------------------------- model glue (plain JAX) -----------------------------

def transformer_layer(h, mask, p, num_heads):
    B, S, H = h.shape
    hd = H // num_heads
    x = h.reshape(B * S, H)

    # LN1 fused into the QKV projection.
    qkv = fused_linear(x, p["qkv_w"], p["qkv_b"], ln=(p["ln1_g"], p["ln1_b"]))
    # GLM splits [B,S,3H] into q|k|v chunks of H, then splits heads.
    qkv = qkv.reshape(B, S, 3, num_heads, hd)
    q = qkv[:, :, 0].transpose(0, 2, 1, 3)
    k = qkv[:, :, 1].transpose(0, 2, 1, 3)
    v = qkv[:, :, 2].transpose(0, 2, 1, 3)

    ctx = flash_attention(q, k, v, mask)
    ctx = ctx.transpose(0, 2, 1, 3).reshape(B * S, H)
    # TODO(synk): head split/merge transposes remain XLA glue; a head-major out_spec on the
    # QKV kernel could eliminate them entirely.

    # attention output projection with the residual add fused into its epilogue.
    resid1 = fused_linear(ctx, p["attn_o_w"], p["attn_o_b"], residual=x)

    # LN2 fused into MLP-w1 (+GELU epilogue); second residual fused into MLP-w2 epilogue.
    mlp_h = fused_linear(resid1, p["mlp_w1"], p["mlp_b1"],
                         ln=(p["ln2_g"], p["ln2_b"]), activation="gelu")
    out = fused_linear(mlp_h, p["mlp_w2"], p["mlp_b2"], residual=resid1)
    return out.reshape(B, S, H)


def transformer(embeddings, position_ids, mask, params, num_heads, *, apply_final_ln=True):
    h = embeddings + params["pos_emb"][position_ids]   # embedding gather = XLA glue
    # embedding/attention/output dropout omitted (eval mode -> identity)
    for layer_params in params["layers"]:
        h = transformer_layer(h, mask, layer_params, num_heads)
    if not apply_final_ln:
        return h
    B, S, H = h.shape
    out = pallas_layernorm(h.reshape(B * S, H),
                           params["final_ln_g"], params["final_ln_b"])
    return out.reshape(B, S, H)


def encoder_decoder_forward(params, source_ids, target_ids,
                            source_position_ids, target_position_ids,
                            source_mask, target_mask, num_heads):
    emb = params["word_embeddings"]                       # [V, H]
    source_embeddings = emb[source_ids]                   # [B, S, H]
    target_embeddings = emb[target_ids]                   # [B, S, H]

    encoder_output = transformer(source_embeddings, source_position_ids,
                                 source_mask, params["encoder"], num_heads)
    # Decoder: keep the pre-final-LN hidden so the final LayerNorm fuses into the
    # logits projection kernel below.
    decoder_hidden = transformer(target_embeddings, target_position_ids,
                                 target_mask, params["decoder"], num_heads,
                                 apply_final_ln=False)
    del encoder_output  # reference forward computes but never feeds it to the decoder

    B, S, H = decoder_hidden.shape
    V = emb.shape[0]
    # output_predict=True, parallel_output=True -> logits = F.linear(LN(dec_out), word_emb)
    logits = fused_linear(decoder_hidden.reshape(B * S, H), emb,
                          jnp.zeros((V,), emb.dtype),
                          ln=(params["decoder"]["final_ln_g"],
                              params["decoder"]["final_ln_b"]))
    return (logits.reshape(B, S, V),)


# ----------------------------- deterministic parameter init -----------------------------

def init_params(key, num_layers, vocab_size, hidden_size, max_seq):
    H = hidden_size
    k_emb, k_enc, k_dec = jax.random.split(key, 3)
    word_emb = 0.02 * jax.random.normal(k_emb, (vocab_size, H), jnp.float32)

    def init_stack(k):
        ks = jax.random.split(k, num_layers + 1)
        pos_emb = 0.02 * jax.random.normal(ks[0], (max_seq, H), jnp.float32)
        layers = []
        for i in range(num_layers):
            lk = jax.random.split(ks[i + 1], 4)
            layers.append(dict(
                ln1_g=jnp.ones((H,), jnp.float32), ln1_b=jnp.zeros((H,), jnp.float32),
                qkv_w=0.02 * jax.random.normal(lk[0], (3 * H, H), jnp.float32),
                qkv_b=jnp.zeros((3 * H,), jnp.float32),
                attn_o_w=0.02 * jax.random.normal(lk[1], (H, H), jnp.float32),
                attn_o_b=jnp.zeros((H,), jnp.float32),
                ln2_g=jnp.ones((H,), jnp.float32), ln2_b=jnp.zeros((H,), jnp.float32),
                mlp_w1=0.02 * jax.random.normal(lk[2], (4 * H, H), jnp.float32),
                mlp_b1=jnp.zeros((4 * H,), jnp.float32),
                mlp_w2=0.02 * jax.random.normal(lk[3], (H, 4 * H), jnp.float32),
                mlp_b2=jnp.zeros((H,), jnp.float32),
            ))
        return dict(pos_emb=pos_emb, layers=layers,
                    final_ln_g=jnp.ones((H,), jnp.float32),
                    final_ln_b=jnp.zeros((H,), jnp.float32))

    return dict(word_embeddings=word_emb,
                encoder=init_stack(k_enc),
                decoder=init_stack(k_dec))


# ----------------------------- demo -----------------------------

if __name__ == "__main__":
    B, S, H, NH, V, L, MAX_SEQ = 2, 8, 32, 4, 64, 2, 16

    key = jax.random.PRNGKey(0)
    k_params, k_src, k_tgt = jax.random.split(key, 3)
    params = init_params(k_params, L, V, H, MAX_SEQ)

    source_ids = jax.random.randint(k_src, (B, S), 0, V, dtype=jnp.int32)
    target_ids = jax.random.randint(k_tgt, (B, S), 0, V, dtype=jnp.int32)
    source_position_ids = jnp.tile(jnp.arange(S, dtype=jnp.int32)[None, :], (B, 1))
    target_position_ids = jnp.tile(jnp.arange(S, dtype=jnp.int32)[None, :], (B, 1))

    # encoder: full (bidirectional) mask; decoder: causal mask. Shape [B, 1, S, S], float.
    source_mask = jnp.ones((B, 1, S, S), jnp.float32)
    causal = jnp.tril(jnp.ones((S, S), jnp.float32))
    target_mask = jnp.tile(causal[None, None, :, :], (B, 1, 1, 1))

    (logits,) = encoder_decoder_forward(params, source_ids, target_ids,
                                        source_position_ids, target_position_ids,
                                        source_mask, target_mask, NH)
    jax.block_until_ready(logits)
    assert logits.shape == (B, S, V) and logits.dtype == jnp.float32
    print("KERNEL_OK")
</pallas_src>

<mosaic_0001>
module attributes {stable_mosaic.version = 11 : i64} {
  func.func @kernel(%arg0: i32, %arg1: i32, %arg2: i32, %arg3: memref<16x32xf32, #tpu.memory_space<vmem>>, %arg4: memref<96x32xf32, #tpu.memory_space<vmem>>, %arg5: memref<1x96xf32, #tpu.memory_space<vmem>>, %arg6: memref<1x32xf32, #tpu.memory_space<vmem>>, %arg7: memref<1x32xf32, #tpu.memory_space<vmem>>, %arg8: memref<16x96xf32, #tpu.memory_space<vmem>>, %arg9: memref<16x96xf32, #tpu.memory_space<vmem>>) attributes {dimension_semantics = [#tpu.dimension_semantics<parallel>, #tpu.dimension_semantics<parallel>, #tpu.dimension_semantics<arbitrary>], iteration_bounds = array<i64: 1, 1, 1>, scalar_prefetch = 0 : i64, scratch_operands = 1 : i64, tpu.core_type = #tpu.core_type<tc>, window_params = [{transform_indices = @transform_0, window_bounds = array<i64: 16, 32>}, {transform_indices = @transform_1, window_bounds = array<i64: 96, 32>}, {transform_indices = @transform_2, window_bounds = array<i64: 1, 96>}, {transform_indices = @transform_3, window_bounds = array<i64: 1, 32>}, {transform_indices = @transform_4, window_bounds = array<i64: 1, 32>}, {transform_indices = @transform_5, window_bounds = array<i64: 16, 96>}]} {
    %c0_i32 = arith.constant 0 : i32
    %0 = arith.cmpi eq, %arg2, %c0_i32 : i32
    %1 = arith.extui %0 : i1 to i32
    %c0_i32_0 = arith.constant 0 : i32
    %2 = arith.cmpi ne, %1, %c0_i32_0 : i32
    scf.if %2 {
      %cst_19 = arith.constant 0.000000e+00 : f32
      %36 = vector.broadcast %cst_19 : f32 to vector<16x96xf32>
      %c0_20 = arith.constant 0 : index
      %c0_21 = arith.constant 0 : index
      %37 = vector.load %arg9[%c0_20, %c0_21] : memref<16x96xf32, #tpu.memory_space<vmem>>, vector<16x96xf32>
      tpu.vector_store %arg9[%c0_20, %c0_21], %36 {strides = array<i32>} : memref<16x96xf32, #tpu.memory_space<vmem>>, vector<16x96xf32>,
    } else {
    }
    %c0 = arith.constant 0 : index
    %c0_1 = arith.constant 0 : index
    %3 = vector.load %arg3[%c0, %c0_1] : memref<16x32xf32, #tpu.memory_space<vmem>>, vector<16x32xf32>
    %cst = arith.constant dense<0.000000e+00> : vector<16xf32>
    %4 = vector.multi_reduction <add>, %3, %cst [1] : vector<16x32xf32> to vector<16xf32>
    %5 = vector.shape_cast %4 : vector<16xf32> to vector<16x1xf32>
    %cst_2 = arith.constant 3.200000e+01 : f32
    %6 = vector.broadcast %cst_2 : f32 to vector<16x1xf32>
    %7 = arith.divf %5, %6 : vector<16x1xf32>
    %8 = vector.broadcast %7 : vector<16x1xf32> to vector<16x32xf32>
    %9 = arith.subf %3, %8 : vector<16x32xf32>
    %10 = arith.mulf %9, %9 : vector<16x32xf32>
    %cst_3 = arith.constant dense<0.000000e+00> : vector<16xf32>
    %11 = vector.multi_reduction <add>, %10, %cst_3 [1] : vector<16x32xf32> to vector<16xf32>
    %12 = vector.shape_cast %11 : vector<16xf32> to vector<16x1xf32>
    %cst_4 = arith.constant 3.200000e+01 : f32
    %13 = vector.broadcast %cst_4 : f32 to vector<16x1xf32>
    %14 = arith.divf %12, %13 : vector<16x1xf32>
    %15 = vector.broadcast %7 : vector<16x1xf32> to vector<16x32xf32>
    %16 = arith.subf %3, %15 : vector<16x32xf32>
    %cst_5 = arith.constant 9.99999974E-6 : f32
    %17 = vector.broadcast %cst_5 : f32 to vector<16x1xf32>
    %18 = arith.addf %14, %17 : vector<16x1xf32>
    %19 = math.rsqrt %18 : vector<16x1xf32>
    %20 = vector.broadcast %19 : vector<16x1xf32> to vector<16x32xf32>
    %21 = arith.mulf %16, %20 : vector<16x32xf32>
    %c0_6 = arith.constant 0 : index
    %c0_7 = arith.constant 0 : index
    %22 = vector.load %arg6[%c0_6, %c0_7] : memref<1x32xf32, #tpu.memory_space<vmem>>, vector<1x32xf32>
    %23 = vector.broadcast %22 : vector<1x32xf32> to vector<16x32xf32>
    %24 = arith.mulf %21, %23 : vector<16x32xf32>
    %c0_8 = arith.constant 0 : index
    %c0_9 = arith.constant 0 : index
    %25 = vector.load %arg7[%c0_8, %c0_9] : memref<1x32xf32, #tpu.memory_space<vmem>>, vector<1x32xf32>
    %26 = vector.broadcast %25 : vector<1x32xf32> to vector<16x32xf32>
    %27 = arith.addf %24, %26 : vector<16x32xf32>
    %c0_10 = arith.constant 0 : index
    %c0_11 = arith.constant 0 : index
    %28 = vector.load %arg4[%c0_10, %c0_11] : memref<96x32xf32, #tpu.memory_space<vmem>>, vector<96x32xf32>
    %c0_12 = arith.constant 0 : index
    %c0_13 = arith.constant 0 : index
    %29 = vector.load %arg9[%c0_12, %c0_13] : memref<16x96xf32, #tpu.memory_space<vmem>>, vector<16x96xf32>
    %cst_14 = arith.constant dense<0.000000e+00> : vector<16x96xf32>
    %30 = tpu.matmul %27, %28, %cst_14 {dimension_numbers = #tpu.dot_dimension_numbers<[1], [1], [0], [0], [0, 0, 1, 0], [], []>} : vector<16x32xf32>, vector<96x32xf32>, vector<16x96xf32> -> vector<16x96xf32>
    %31 = arith.addf %29, %30 : vector<16x96xf32>
    %c0_15 = arith.constant 0 : index
    %c0_16 = arith.constant 0 : index
    %32 = vector.load %arg9[%c0_15, %c0_16] : memref<16x96xf32, #tpu.memory_space<vmem>>, vector<16x96xf32>
    tpu.vector_store %arg9[%c0_15, %c0_16], %31 {strides = array<i32>} : memref<16x96xf32, #tpu.memory_space<vmem>>, vector<16x96xf32>,
    %c0_i32_17 = arith.constant 0 : i32
    %33 = arith.cmpi eq, %arg2, %c0_i32_17 : i32
    %34 = arith.extui %33 : i1 to i32
    %c0_i32_18 = arith.constant 0 : i32
    %35 = arith.cmpi ne, %34, %c0_i32_18 : i32
    scf.if %35 {
      %c0_19 = arith.constant 0 : index
      %c0_20 = arith.constant 0 : index
      %36 = vector.load %arg9[%c0_19, %c0_20] : memref<16x96xf32, #tpu.memory_space<vmem>>, vector<16x96xf32>
      %c0_21 = arith.constant 0 : index
      %c0_22 = arith.constant 0 : index
      %37 = vector.load %arg5[%c0_21, %c0_22] : memref<1x96xf32, #tpu.memory_space<vmem>>, vector<1x96xf32>
      %38 = vector.broadcast %37 : vector<1x96xf32> to vector<16x96xf32>
      %39 = arith.addf %36, %38 : vector<16x96xf32>
      %c0_23 = arith.constant 0 : index
      %c0_24 = arith.constant 0 : index
      %40 = vector.load %arg8[%c0_23, %c0_24] : memref<16x96xf32, #tpu.memory_space<vmem>>, vector<16x96xf32>
      tpu.vector_store %arg8[%c0_23, %c0_24], %39 {strides = array<i32>} : memref<16x96xf32, #tpu.memory_space<vmem>>, vector<16x96xf32>,
    } else {
    }
    return
  }
  func.func @transform_0(%arg0: i32, %arg1: i32, %arg2: i32) -> (i32, i32) {
    %c0_i32 = arith.constant 0 : i32
    return %arg0, %arg2 : i32, i32
  }
  func.func @transform_1(%arg0: i32, %arg1: i32, %arg2: i32) -> (i32, i32) {
    %c0_i32 = arith.constant 0 : i32
    return %arg1, %arg2 : i32, i32
  }
  func.func @transform_2(%arg0: i32, %arg1: i32, %arg2: i32) -> (i32, i32) {
    %c0_i32 = arith.constant 0 : i32
    %c0_i32_0 = arith.constant 0 : i32
    return %c0_i32, %arg1 : i32, i32
  }
  func.func @transform_3(%arg0: i32, %arg1: i32, %arg2: i32) -> (i32, i32) {
    %c0_i32 = arith.constant 0 : i32
    %c0_i32_0 = arith.constant 0 : i32
    return %c0_i32, %arg2 : i32, i32
  }
  func.func @transform_4(%arg0: i32, %arg1: i32, %arg2: i32) -> (i32, i32) {
    %c0_i32 = arith.constant 0 : i32
    %c0_i32_0 = arith.constant 0 : i32
    return %c0_i32, %arg2 : i32, i32
  }
  func.func @transform_5(%arg0: i32, %arg1: i32, %arg2: i32) -> (i32, i32) {
    %c0_i32 = arith.constant 0 : i32
    return %arg0, %arg1 : i32, i32
  }
}

</mosaic_0001>

<llo_original>
// kernel: tpu_custom_call.1
$region0: #{tpu_custom_call.1}
  #allocation0 [shape = 'u32[]', space=smem, size = 0x4, offset = 0x4, fixed_abs, tag = 'smem constant byte address 0x4 - core index']
  #allocation1 [shape = 'u32[144,128]{1,0:T(1,128)}', space=vmem, size = 0x12000, scoped, tag = 'internal scratch']
  #allocation2 [shape = 'f32[16,96]{1,0:T(8,128)}', space=vmem, size = 0x2000, scoped, tag = 'scratch operand']
  %s0 = inlined_call_operand.vmem [shape: f32[16,32], index: 0, kind: input, shape index: {}]
  %s1 = inlined_call_operand.vmem [shape: f32[96,32], index: 1, kind: input, shape index: {}]
  %s2 = inlined_call_operand.vmem [shape: f32[1,96], index: 2, kind: input, shape index: {}]
  %s3 = inlined_call_operand.vmem [shape: f32[1,32], index: 3, kind: input, shape index: {}]
  %s4 = inlined_call_operand.vmem [shape: f32[1,32], index: 4, kind: input, shape index: {}]
  %s5 = inlined_call_operand.hbm [shape: f32[16,96], index: 5, kind: output, shape index: {}]
  %s6 = sld [smem:[#allocation0]]
  $region38: #{tpu_custom_call.1} parent=0
    _
  %s8 = ssub.s32 1, %s6
  %s9 = scalar_select 0, %s8, %s6
  $region1: #{tpu_custom_call.1} parent=0
    #allocation3 [shape = 'u8[8192]{0}', space=vmem, size = 0x2000, scoped, tag = 'output window, operand 0, single buffered']
    #allocation4 [shape = 's32[1]{0}', space=sflag, size = 0x4, scoped, tag = 'scoped memory for tpu_custom_call.1']
    %10 = vsyncpa [#allocation4], 0
    // Predicated region
    $region2: #{tpu_custom_call.1} parent=1 // pred_check
      _
    $region3: #{tpu_custom_call.1} parent=1 // pred_check_branch
      %12 = sbr.rel (0) target = $region5
    $region4: #{tpu_custom_call.1} parent=1 // pred_region
      _
    $region5: #{tpu_custom_call.1} parent=1 // pred_fallthru
      _
    // Predicated region
    $region6: #{tpu_custom_call.1} parent=1 // pred_check
      _
    $region7: #{tpu_custom_call.1} parent=1 // pred_check_branch
      %14 = sbr.rel (0) target = $region9
    $region8: #{tpu_custom_call.1} parent=1 // pred_region
      _
    $region9: #{tpu_custom_call.1} parent=1 // pred_fallthru
      _
    // Predicated region
    $region10: #{tpu_custom_call.1} parent=1 // pred_check
      _
    $region11: #{tpu_custom_call.1} parent=1 // pred_check_branch
      %16 = sbr.rel (0) target = $region13
    $region12: #{tpu_custom_call.1} parent=1 // pred_region
      _
    $region13: #{tpu_custom_call.1} parent=1 // pred_fallthru
      _
    // Predicated region
    $region14: #{tpu_custom_call.1} parent=1 // pred_check
      _
    $region15: #{tpu_custom_call.1} parent=1 // pred_check_branch
      %18 = sbr.rel (0) target = $region17
    $region16: #{tpu_custom_call.1} parent=1 // pred_region
      _
    $region17: #{tpu_custom_call.1} parent=1 // pred_fallthru
      _
    // Predicated region
    $region18: #{tpu_custom_call.1} parent=1 // pred_check
      _
    $region19: #{tpu_custom_call.1} parent=1 // pred_check_branch
      %20 = sbr.rel (0) target = $region21
    $region20: #{tpu_custom_call.1} parent=1 // pred_region
      _
    $region21: #{tpu_custom_call.1} parent=1 // pred_fallthru
      _
    %p21 = scmp.eq.s32.totalorder 0, 0
    // Predicated region
    $region22: #{tpu_custom_call.1} parent=1 // pred_check
      %p22 = pneg %p21
    $region23: #{tpu_custom_call.1} parent=1 // pred_check_branch
      %24 = sbr.rel (%p22) target = $region25
    $region24: #{tpu_custom_call.1} parent=1 // pred_region
      %vm25 = vcmask 785408
      %26 = vst.msk [vmem:[#allocation2] sm:$0xff] %vm25, 0.0
      %27 = vst.msk [vmem:[#allocation2 + $0x8] sm:$0xff] %vm25, 0.0
    $region25: #{tpu_custom_call.1} parent=1 // pred_fallthru
      _
    %v28 = vld [vmem:[%s0] sm:$0xff]
    %v29 = vld [vmem:[%s0 + $0x8] sm:$0xff]
    %vm30 = vcmask 261120
    %v31 = vsel %vm30, %v28, 0.0
    %32 = vadd.xlane.f32.xlu0 %v31
    %v33 = vpop.xlane.xlu0 %32
    %v34 = vsel %vm30, %v29, 0.0
    %35 = vadd.xlane.f32.xlu0 %v34
    %v36 = vpop.xlane.xlu0 %35
    %v37 = vrcp.pop 32.0
    %v38 = vmul.f32 %v33, %v37
    %v39 = vmul.f32 %v36, %v37
    %v40 = vsub.f32 %v28, %v38
    %v41 = vsub.f32 %v29, %v39
    %v42 = vmul.f32 %v40, %v40
    %v43 = vmul.f32 %v41, %v41
    %v44 = vsel %vm30, %v42, 0.0
    %45 = vadd.xlane.f32.xlu0 %v44
    %v46 = vpop.xlane.xlu0 %45
    %v47 = vsel %vm30, %v43, 0.0
    %48 = vadd.xlane.f32.xlu0 %v47
    %v49 = vpop.xlane.xlu0 %48
    %v50 = vmul.f32 %v46, %v37
    %v51 = vmul.f32 %v49, %v37
    %v52 = vadd.f32 %v50, 1e-05
    %v53 = vadd.f32 %v51, 1e-05
    %v54 = vrsqrt.pop %v52
    %v55 = vrsqrt.pop %v53
    %v56 = vmul.f32 %v40, %v54
    %v57 = vmul.f32 %v41, %v55
    %v58 = vld [vmem:[%s3] sm:$0x1]
    %v60 = vlaneseq
    %v61 = vshrl.u32 %v60, 7
    %v62 = vsub.s32 0, %v61
    %v63 = vrot.slane %v58, %v62
    %v65 = vmul.f32 %v56, %v63
    %v66 = vmul.f32 %v57, %v63
    %v67 = vld [vmem:[%s4] sm:$0x1]
    %v69 = vlaneseq
    %v70 = vshrl.u32 %v69, 7
    %v71 = vsub.s32 0, %v70
    %v72 = vrot.slane %v67, %v71
    %v74 = vadd.f32 %v65, %v72
    %v75 = vadd.f32 %v66, %v72
    %v76 = vld [vmem:[%s1] sm:$0xff]
    %v77 = vld [vmem:[%s1 + $0x8] sm:$0xff]
    %v78 = vld [vmem:[%s1 + $0x10] sm:$0xff]
    %v79 = vld [vmem:[%s1 + $0x18] sm:$0xff]
    %v80 = vld [vmem:[%s1 + $0x20] sm:$0xff]
    %v81 = vld [vmem:[%s1 + $0x28] sm:$0xff]
    %v82 = vld [vmem:[%s1 + $0x30] sm:$0xff]
    %v83 = vld [vmem:[%s1 + $0x38] sm:$0xff]
    %v84 = vld [vmem:[%s1 + $0x40] sm:$0xff]
    %v85 = vld [vmem:[%s1 + $0x48] sm:$0xff]
    %v86 = vld [vmem:[%s1 + $0x50] sm:$0xff]
    %v87 = vld [vmem:[%s1 + $0x58] sm:$0xff]
    %v88 = vld [vmem:[#allocation2] sm:$0xff]
    %v89 = vld [vmem:[#allocation2 + $0x8] sm:$0xff]
    %v91 = vsel %vm30, %v74, 0
    %v94 = vsel %vm30, %v75, 0
    %v97 = vsel %vm30, %v76, 0
    %v100 = vsel %vm30, %v77, 0
    %v103 = vsel %vm30, %v78, 0
    %v106 = vsel %vm30, %v79, 0
    %v109 = vsel %vm30, %v80, 0
    %v112 = vsel %vm30, %v81, 0
    %v115 = vsel %vm30, %v82, 0
    %v118 = vsel %vm30, %v83, 0
    %v121 = vsel %vm30, %v84, 0
    %v124 = vsel %vm30, %v85, 0
    %v127 = vsel %vm30, %v86, 0
    %v130 = vsel %vm30, %v87, 0
    %132 = vmatprep.subr.mxu0 0.0
    %133 = vmatpush1.xpose.msra.mxu0 %v97
    %134 = vmatprep.subr.mxu0 0.0
    %135 = vmatpush1.xpose.msra.mxu0 %v100
    %136 = vmatprep.subr.mxu0 0.0
    %137 = vmatpush1.xpose.msra.mxu0 %v103
    %138 = vmatprep.subr.mxu0 0.0
    %139 = vmatpush1.xpose.msra.mxu0 %v106
    %140 = vmatprep.subr.mxu0 0.0
    %141 = vmatpush1.xpose.msra.mxu0 %v109
    %142 = vmatprep.subr.mxu0 0.0
    %143 = vmatpush1.xpose.msra.mxu0 %v112
    %144 = vmatprep.subr.mxu0 0.0
    %145 = vmatpush1.xpose.msra.mxu0 %v115
    %146 = vmatprep.subr.mxu0 0.0
    %147 = vmatpush1.xpose.msra.mxu0 %v118
    %148 = vmatprep.subr.mxu0 0.0
    %149 = vmatpush1.xpose.msra.mxu0 %v121
    %150 = vmatprep.subr.mxu0 0.0
    %151 = vmatpush1.xpose.msra.mxu0 %v124
    %152 = vmatprep.subr.mxu0 0.0
    %153 = vmatpush1.xpose.msra.mxu0 %v127
    %154 = vmatprep.subr.mxu0 0.0
    %155 = vmatpush1.xpose.msra.mxu0 %v130
    %156 = vmatprep.subr.mxu0 0.0
    %157 = vmatpush1.xpose.msra.mxu0 0.0
    %158 = vmatprep.subr.mxu0 0.0
    %159 = vmatpush1.xpose.msra.mxu0 0.0
    %160 = vmatprep.subr.mxu0 0.0
    %161 = vmatpush1.xpose.msra.mxu0 0.0
    %162 = vmatprep.subr.mxu0 0.0
    %163 = vmatpush1.xpose.msra.mxu0 0.0
    %164 = vmatprep.subr.mxu0 0.0
    %165 = vmatpush1.xpose.msra.mxu0 0.0
    %166 = vmatprep.subr.mxu0 0.0
    %167 = vmatpush1.xpose.msra.mxu0 0.0
    %168 = vmatprep.subr.mxu0 0.0
    %169 = vmatpush1.xpose.msra.mxu0 0.0
    %170 = vmatprep.subr.mxu0 0.0
    %171 = vmatpush1.xpose.msra.mxu0 0.0
    %172 = vmatprep.subr.mxu0 0.0
    %173 = vmatpush1.xpose.msra.mxu0 0.0
    %174 = vmatprep.subr.mxu0 0.0
    %175 = vmatpush1.xpose.msra.mxu0 0.0
    %176 = vmatprep.subr.mxu0 0.0
    %177 = vmatpush1.xpose.msra.mxu0 0.0
    %178 = vmatprep.subr.mxu0 0.0
    %179 = vmatpush1.xpose.msra.mxu0 0.0
    %180 = vmatprep.subr.mxu0 0.0
    %181 = vmatpush1.xpose.msra.mxu0 0.0
    %182 = vmatprep.subr.mxu0 0.0
    %183 = vmatpush1.xpose.msra.mxu0 0.0
    %184 = vmatprep.subr.mxu0 0.0
    %185 = vmatpush1.xpose.msra.mxu0 0.0
    %186 = vmatprep.subr.mxu0 0.0
    %187 = vmatpush1.xpose.msra.mxu0 0.0
    %188 = vmatprep.subr.mxu0 0.0
    %189 = vmatpush1.xpose.msra.mxu0 0.0
    %190 = vmatprep.subr.mxu0 0.0
    %191 = vmatpush1.xpose.msra.mxu0 0.0
    %192 = vmatprep.subr.mxu0 0.0
    %193 = vmatpush1.xpose.msra.mxu0 0.0
    %194 = vmatprep.subr.mxu0 0.0
    %195 = vmatpush1.xpose.msra.mxu0 0.0
    %196 = vmatprep.mubr.f32.mxu0 0.0
    %197 = vmatmul.mubr.f32.gmra.mrb[0].mxu0 %v91
    %v198 = vpop.f32.mrb[0].mxu0
    %v199 = vadd.f32 0.0, %v198
    %v200 = vpop.f32.mrb[0].mxu0
    %201 = vmatprep.mubr.f32.mxu0 0.0
    %202 = vmatmul.mubr.f32.gmra.mrb[0].mxu0 %v94
    %v203 = vpop.f32.mrb[0].mxu0
    %v204 = vadd.f32 0.0, %v203
    %v205 = vpop.f32.mrb[0].mxu0
    %206 = vdwg.mxu0
    %v207 = vadd.f32 %v88, %v199
    %v208 = vadd.f32 %v89, %v204
    %vm209 = vcmask 785408
    %210 = vst.msk [vmem:[#allocation2] sm:$0xff] %vm209, %v207
    %211 = vst.msk [vmem:[#allocation2 + $0x8] sm:$0xff] %vm209, %v208
    // Predicated region
    $region26: #{tpu_custom_call.1} parent=1 // pred_check
      %p212 = pneg %p21
    $region27: #{tpu_custom_call.1} parent=1 // pred_check_branch
      %214 = sbr.rel (%p212) target = $region29
    $region28: #{tpu_custom_call.1} parent=1 // pred_region
      %v215 = vld [vmem:[#allocation2] sm:$0xff]
      %v216 = vld [vmem:[#allocation2 + $0x8] sm:$0xff]
      %v217 = vld [vmem:[%s2] sm:$0x1]
      %v219 = vlaneseq
      %v220 = vshrl.u32 %v219, 7
      %v221 = vsub.s32 0, %v220
      %v222 = vrot.slane %v217, %v221
      %v224 = vadd.f32 %v215, %v222
      %v225 = vadd.f32 %v216, %v222
      %226 = vst.msk [vmem:[#allocation3] sm:$0xff] %vm209, %v224
      %227 = vst.msk [vmem:[#allocation3 + $0x8] sm:$0xff] %vm209, %v225
    $region29: #{tpu_custom_call.1} parent=1 // pred_fallthru
      _
    // Predicated region
    $region30: #{tpu_custom_call.1} parent=1 // pred_check
      _
    $region31: #{tpu_custom_call.1} parent=1 // pred_check_branch
      %229 = sbr.rel (0) target = $region33
    $region32: #{tpu_custom_call.1} parent=1 // pred_region
      %s231 = ssub.s32 256, 256
      %232 = vsyncadd [#allocation4], %s231
      %s233 = sshll.u32 [#allocation3], 4
      %s234 = int_to_ptr.vmem [resolvable:$true] %s233
      %239 = dma.vmem_to_hbm [thread:$0]  %s234, 256, %s5, [#allocation4], 128, 128, 8
    $region33: #{tpu_custom_call.1} parent=1 // pred_fallthru
      _
    // Predicated region
    $region34: #{tpu_custom_call.1} parent=1 // pred_check
      _
    $region35: #{tpu_custom_call.1} parent=1 // pred_check_branch
      %241 = sbr.rel (0) target = $region37
    $region36: #{tpu_custom_call.1} parent=1 // pred_region
      %242 = dma.done [#allocation4], 256
    $region37: #{tpu_custom_call.1} parent=1 // pred_fallthru
      _
    %243 = vsyncpa [#allocation4], 1

</llo_original>
